<compile_context>
chip_gen: v5e
topology: v5e:2x2
jax: 0.10.0
libtpu: 0.0.40
codegen_flags: <defaults>
</compile_context>

<pallas_src>
import functools

import jax
import jax.numpy as jnp
from jax.experimental import pallas as pl
from jax.experimental.pallas import tpu as pltpu

BN_EPS = 1e-5


def _round_up(x, m):
    return ((x + m - 1) // m) * m


def _chip_config():
    """Per-generation M-tile target and scoped-VMEM budget."""
    tm, vmem = 1024, 64 * 1024 * 1024            # v5e / v6e: 128 MiB physical
    try:
        cap = getattr(pltpu.get_tpu_info(), "vmem_capacity_bytes", None)
        if cap is not None and cap <= 64 * 1024 * 1024:  # v7x: 64 MiB per TC
            vmem = 48 * 1024 * 1024
    except Exception:                            # unknown chip / interpret
        tm, vmem = 512, 32 * 1024 * 1024
    return tm, vmem


TM_TARGET, VMEM_LIMIT = _chip_config()


# ---------------------------------------------------------------------------
# Pallas kernels
# ---------------------------------------------------------------------------
def _fused_conv_bn_kernel(p_ref, w_ref, g_ref, b_ref, *rest, relu, res_mode):
    """Single-tile conv-as-matmul (bf16 MXU, f32 acc) + BN (training batch
    stats over the full M, which is entirely inside this tile) + optional
    residual (identity or fused 1x1-proj conv + BN) + ReLU."""

    def conv_bn(pref, wref, gref, bref):
        acc = jnp.dot(pref[...], wref[...], preferred_element_type=jnp.float32)
        mean = jnp.mean(acc, axis=0, keepdims=True)
        # NOTE: E[x^2]-mean^2 in f32; Welford/two-pass if tolerance tightens.
        var = jnp.maximum(
            jnp.mean(acc * acc, axis=0, keepdims=True) - mean * mean, 0.0)
        scale = gref[...] * jax.lax.rsqrt(var + BN_EPS)
        return (acc - mean) * scale + bref[...]

    y = conv_bn(p_ref, w_ref, g_ref, b_ref)
    if res_mode == "identity":
        res_ref, o_ref = rest
        y = y + res_ref[...].astype(jnp.float32)
    elif res_mode == "proj":
        pd_ref, wd_ref, gd_ref, bd_ref, o_ref = rest
        y = y + conv_bn(pd_ref, wd_ref, gd_ref, bd_ref)
    else:
        (o_ref,) = rest
    if relu:
        y = jnp.maximum(y, 0.0)
    o_ref[...] = y.astype(o_ref.dtype)


def _matmul_stats_kernel(p_ref, w_ref, *rest, tm, m_valid, m_pad, with_proj):
    """Tiled conv-as-matmul (bf16 MXU, f32 acc) + per-tile BN partial stats.

    raw output is bf16 (halves HBM writeback/re-read); stats are folded from
    the f32 accumulator.  Optionally also runs the 1x1 downsample-projection
    matmul of a ResNet block in the same grid step (with_proj=True)."""
    if with_proj:
        pd_ref, wd_ref, raw_ref, stats_ref, rawd_ref, statsd_ref = rest
    else:
        raw_ref, stats_ref = rest

    def mm_and_stats(pref, wref, rref, sref):
        acc = jnp.dot(pref[...], wref[...], preferred_element_type=jnp.float32)
        rref[...] = acc.astype(rref.dtype)
        if m_valid == m_pad:
            a = acc
        else:
            # Mask padded tail rows out of the BN statistics.
            row = pl.program_id(0) * tm + jax.lax.broadcasted_iota(
                jnp.int32, (tm, 1), 0)
            a = jnp.where(row < m_valid, acc, 0.0)
        s = jnp.sum(a, axis=0, keepdims=True)           # (1, C)
        sq = jnp.sum(a * a, axis=0, keepdims=True)      # (1, C)
        sref[0:1, 0:1, :] = s[None]                     # direct stores,
        sref[0:1, 1:2, :] = sq[None]                    # no concatenate

    mm_and_stats(p_ref, w_ref, raw_ref, stats_ref)
    if with_proj:
        mm_and_stats(pd_ref, wd_ref, rawd_ref, statsd_ref)


def _bn_act_kernel(raw_ref, s_ref, b_ref, *rest, relu, res_mode):
    """Tiled BN normalize (+ residual add, + fused downsample BN) (+ ReLU)."""
    y = raw_ref[...].astype(jnp.float32) * s_ref[...] + b_ref[...]
    if res_mode == "identity":
        res_ref, o_ref = rest
        y = y + res_ref[...].astype(jnp.float32)
    elif res_mode == "proj":
        res_ref, rs_ref, rb_ref, o_ref = rest
        y = y + (res_ref[...].astype(jnp.float32) * rs_ref[...] + rb_ref[...])
    else:
        (o_ref,) = rest
    if relu:
        y = jnp.maximum(y, 0.0)
    o_ref[...] = y.astype(o_ref.dtype)


# ---------------------------------------------------------------------------
# pallas_call wrappers
# ---------------------------------------------------------------------------
def _full_spec(shape):
    n = len(shape)
    return pl.BlockSpec(shape, lambda *_, _n=n: (0,) * _n)


def _tiling(m):
    """(tm, m_pad, grid_m).  grid_m == 1 -> fused single-launch path."""
    if m <= TM_TARGET:
        return m, m, 1
    # split into >= 2 balanced tiles (engages both v7x TCs, bounds VMEM)
    tm = min(TM_TARGET, _round_up(pl.cdiv(m, 2), 8))
    m_pad = pl.cdiv(m, tm) * tm
    return tm, m_pad, m_pad // tm


def _pad_rows(a, m_pad):
    m = a.shape[0]
    if m_pad == m:
        return a
    return jnp.pad(a, ((0, m_pad - m), (0, 0)))


def _fused_call(patches, w, gamma, beta, extra, *, relu, res_mode, out_dtype):
    m = patches.shape[0]
    c = w.shape[1]
    inputs = [patches, w, gamma, beta] + list(extra)
    kernel = functools.partial(_fused_conv_bn_kernel, relu=relu,
                               res_mode=res_mode)
    return pl.pallas_call(
        kernel,
        out_shape=jax.ShapeDtypeStruct((m, c), out_dtype),
        in_specs=[_full_spec(a.shape) for a in inputs],
        out_specs=_full_spec((m, c)),
        compiler_params=pltpu.CompilerParams(vmem_limit_bytes=VMEM_LIMIT),
    )(*inputs)


def conv_matmul_stats(patches, w, m_valid, tm, proj_patches=None, proj_w=None):
    """patches: (M_pad, K) bf16, w: (K, C) bf16 -> raw bf16 (M_pad, C) + f32
    per-tile (sum, sumsq) stats."""
    m_pad, k = patches.shape
    c = w.shape[1]
    grid_m = m_pad // tm
    with_proj = proj_patches is not None

    inputs = [patches, w]
    in_specs = [pl.BlockSpec((tm, k), lambda i: (i, 0)),
                pl.BlockSpec((k, c), lambda i: (0, 0))]
    out_shape = [jax.ShapeDtypeStruct((m_pad, c), jnp.bfloat16),
                 jax.ShapeDtypeStruct((grid_m, 2, c), jnp.float32)]
    out_specs = [pl.BlockSpec((tm, c), lambda i: (i, 0)),
                 pl.BlockSpec((1, 2, c), lambda i: (i, 0, 0))]
    if with_proj:
        kd = proj_patches.shape[1]
        cd = proj_w.shape[1]
        inputs += [proj_patches, proj_w]
        in_specs += [pl.BlockSpec((tm, kd), lambda i: (i, 0)),
                     pl.BlockSpec((kd, cd), lambda i: (0, 0))]
        out_shape += [jax.ShapeDtypeStruct((m_pad, cd), jnp.bfloat16),
                      jax.ShapeDtypeStruct((grid_m, 2, cd), jnp.float32)]
        out_specs += [pl.BlockSpec((tm, cd), lambda i: (i, 0)),
                      pl.BlockSpec((1, 2, cd), lambda i: (i, 0, 0))]

    kernel = functools.partial(_matmul_stats_kernel, tm=tm, m_valid=m_valid,
                               m_pad=m_pad, with_proj=with_proj)
    return pl.pallas_call(
        kernel,
        grid=(grid_m,),
        in_specs=in_specs,
        out_specs=out_specs,
        out_shape=out_shape,
        compiler_params=pltpu.CompilerParams(
            dimension_semantics=("parallel",),
            vmem_limit_bytes=VMEM_LIMIT),
    )(*inputs)


def bn_scale_shift(stats, m, gamma, beta):
    """Fold per-tile (sum, sumsq) into per-channel BN scale/shift (f32)."""
    s = jnp.sum(stats[:, 0, :], axis=0)
    sq = jnp.sum(stats[:, 1, :], axis=0)
    mean = s / m
    var = jnp.maximum(sq / m - mean * mean, 0.0)   # biased batch variance
    scale = gamma * jax.lax.rsqrt(var + BN_EPS)    # (1, C)
    shift = beta - mean * scale                    # (1, C)
    return scale, shift


def bn_act(raw, scale, shift, *, relu, tm, residual=None, res_scale=None,
           res_shift=None, out_dtype=jnp.bfloat16):
    m_pad, c = raw.shape
    grid_m = m_pad // tm
    inputs = [raw, scale, shift]
    in_specs = [pl.BlockSpec((tm, c), lambda i: (i, 0)),
                pl.BlockSpec((1, c), lambda i: (0, 0)),
                pl.BlockSpec((1, c), lambda i: (0, 0))]
    res_mode = "none"
    if residual is not None:
        res_mode = "identity" if res_scale is None else "proj"
        inputs.append(residual)
        in_specs.append(pl.BlockSpec((tm, c), lambda i: (i, 0)))
        if res_mode == "proj":
            inputs += [res_scale, res_shift]
            in_specs += [pl.BlockSpec((1, c), lambda i: (0, 0)),
                         pl.BlockSpec((1, c), lambda i: (0, 0))]

    kernel = functools.partial(_bn_act_kernel, relu=relu, res_mode=res_mode)
    return pl.pallas_call(
        kernel,
        grid=(grid_m,),
        in_specs=in_specs,
        out_specs=pl.BlockSpec((tm, c), lambda i: (i, 0)),
        out_shape=jax.ShapeDtypeStruct((m_pad, c), out_dtype),
        compiler_params=pltpu.CompilerParams(
            dimension_semantics=("parallel",),
            vmem_limit_bytes=VMEM_LIMIT),
    )(*inputs)


def conv_block(patches, w, gamma, beta, *, relu, residual=None,
               proj_patches=None, proj_w=None, proj_gamma=None,
               proj_beta=None, out_dtype=jnp.bfloat16):
    """conv-as-matmul + BatchNorm (training batch stats over full M)
    [+ residual (identity | 1x1-proj conv + BN)] [+ ReLU]."""
    m = patches.shape[0]
    tm, m_pad, grid_m = _tiling(m)
    g = gamma.reshape(1, -1).astype(jnp.float32)
    b = beta.reshape(1, -1).astype(jnp.float32)
    if proj_patches is not None:
        gd = proj_gamma.reshape(1, -1).astype(jnp.float32)
        bd = proj_beta.reshape(1, -1).astype(jnp.float32)

    if grid_m == 1:
        # Fully fused single launch: no raw HBM round trip, no row padding.
        if proj_patches is not None:
            extra, res_mode = [proj_patches, proj_w, gd, bd], "proj"
        elif residual is not None:
            extra, res_mode = [residual], "identity"
        else:
            extra, res_mode = [], "none"
        return _fused_call(patches, w, g, b, extra, relu=relu,
                           res_mode=res_mode, out_dtype=out_dtype)

    # Two-pass tiled path for large M (full-batch stats, masked tail rows).
    pp = _pad_rows(patches, m_pad)
    if proj_patches is not None:
        pdp = _pad_rows(proj_patches, m_pad)
        raw, st_, rawd, std_ = conv_matmul_stats(pp, w, m, tm,
                                                 proj_patches=pdp,
                                                 proj_w=proj_w)
        sc, sh = bn_scale_shift(st_, m, g, b)
        scd, shd = bn_scale_shift(std_, m, gd, bd)
        y = bn_act(raw, sc, sh, relu=relu, tm=tm, residual=rawd,
                   res_scale=scd, res_shift=shd, out_dtype=out_dtype)
    elif residual is not None:
        raw, st_ = conv_matmul_stats(pp, w, m, tm)
        sc, sh = bn_scale_shift(st_, m, g, b)
        y = bn_act(raw, sc, sh, relu=relu, tm=tm,
                   residual=_pad_rows(residual, m_pad), out_dtype=out_dtype)
    else:
        raw, st_ = conv_matmul_stats(pp, w, m, tm)
        sc, sh = bn_scale_shift(st_, m, g, b)
        y = bn_act(raw, sc, sh, relu=relu, tm=tm, out_dtype=out_dtype)
    return y[:m]


# ---------------------------------------------------------------------------
# Glue: im2col / maxpool / GAP / fc (pure layout + tiny ops, stay in JAX)
# ---------------------------------------------------------------------------
def im2col(x, kh, kw, stride, pad):
    # x: (N, H, W, C) NHWC (bf16) -> (N*Ho*Wo, K128), K = kh*kw*C c-fastest,
    # zero-padded to a multiple of 128 (lane-dense MXU contraction).
    xp = jnp.pad(x, ((0, 0), (pad, pad), (pad, pad), (0, 0)))
    n, h, w, c = xp.shape
    ho = (h - kh) // stride + 1
    wo = (w - kw) // stride + 1
    cols = []
    for i in range(kh):
        for j in range(kw):
            cols.append(
                xp[:, i: i + stride * (ho - 1) + 1: stride,
                   j: j + stride * (wo - 1) + 1: stride, :])
    patches = jnp.stack(cols, axis=3)                # (N, Ho, Wo, kh*kw, C)
    patches = patches.reshape(n * ho * wo, kh * kw * c)
    k = patches.shape[1]
    kp = _round_up(k, 128)
    if kp != k:
        patches = jnp.pad(patches, ((0, 0), (0, kp - k)))
    return patches, (n, ho, wo)


def maxpool2d(x, k, stride, pad):
    # Plain window max in the wrapper (review: cheaper than a lane-sparse
    # Pallas reduce + extra HBM round trip).
    xp = jnp.pad(x, ((0, 0), (pad, pad), (pad, pad), (0, 0)),
                 constant_values=-jnp.inf)
    n, h, w, c = xp.shape
    ho = (h - k) // stride + 1
    wo = (w - k) // stride + 1
    out = None
    for i in range(k):
        for j in range(k):
            win = xp[:, i: i + stride * (ho - 1) + 1: stride,
                     j: j + stride * (wo - 1) + 1: stride, :]
            out = win if out is None else jnp.maximum(out, win)
    return out


# ---------------------------------------------------------------------------
# ResNet-18 forward (2D basic blocks)
# ---------------------------------------------------------------------------
def basic_block(x, blk):
    n, h, w_, cin = x.shape
    st = blk["stride"]
    cout = blk["w1"].shape[1]

    # conv1 3x3 (stride st) -> BN -> ReLU
    p1, (n1, ho, wo) = im2col(x, 3, 3, st, 1)
    y1 = conv_block(p1, blk["w1"], blk["g1"], blk["b1"], relu=True)
    y1 = y1.reshape(n1, ho, wo, cout)

    # conv2 3x3 (stride 1) -> BN -> (+ residual) -> ReLU
    p2, _ = im2col(y1, 3, 3, 1, 1)
    if "dw" in blk:
        # downsample shortcut (type B): 1x1 conv (stride st) + BN, fused into
        # the same kernel(s) as conv2.
        pd, _ = im2col(x, 1, 1, st, 0)
        y2 = conv_block(p2, blk["w2"], blk["g2"], blk["b2"], relu=True,
                        proj_patches=pd, proj_w=blk["dw"],
                        proj_gamma=blk["dg"], proj_beta=blk["db"])
    else:
        res = x.reshape(n * h * w_, cin)
        y2 = conv_block(p2, blk["w2"], blk["g2"], blk["b2"], relu=True,
                        residual=res)
    return y2.reshape(n1, ho, wo, cout)


def resnet18_forward(x_nchw, params):
    x = jnp.transpose(x_nchw, (0, 2, 3, 1)).astype(jnp.bfloat16)  # NCHW->NHWC
    # stem: conv 7x7 stride 2 pad 3 -> BN -> ReLU -> maxpool 3x3 stride 2 pad 1
    p, (n, ho, wo) = im2col(x, 7, 7, 2, 3)
    y = conv_block(p, params["conv1_w"], params["bn1_g"], params["bn1_b"],
                   relu=True)
    y = y.reshape(n, ho, wo, -1)
    y = maxpool2d(y, 3, 2, 1)
    # 4 stages of 2 basic blocks
    for stage in params["stages"]:
        for blk in stage:
            y = basic_block(y, blk)
    # GAP -> fc(256 -> 1) -> sigmoid: left to XLA (review: lane width 1 makes
    # a Pallas kernel pure launch overhead at ~0.5 KFLOP).
    feat = jnp.mean(y.astype(jnp.float32), axis=(1, 2))          # (N, 256)
    logits = feat @ params["fc_w"] + params["fc_b"]              # (N, 1)
    return jax.nn.sigmoid(logits)


# ---------------------------------------------------------------------------
# Pure-JAX references for the conv+BN kernels (unit checks)
# ---------------------------------------------------------------------------
def _conv_bn_ref(patches, w, gamma, beta, relu):
    acc = patches.astype(jnp.float32) @ w.astype(jnp.float32)
    mean = jnp.mean(acc, axis=0)
    var = jnp.mean((acc - mean) ** 2, axis=0)
    y = (acc - mean) * jax.lax.rsqrt(var + BN_EPS) * gamma + beta
    return jnp.maximum(y, 0.0) if relu else y


def _fused_proj_ref(p, w, g, b, pd, wd, gd, bd, relu):
    y = _conv_bn_ref(p, w, g, b, False) + _conv_bn_ref(pd, wd, gd, bd, False)
    return jnp.maximum(y, 0.0) if relu else y


# ---------------------------------------------------------------------------
# Deterministic parameter construction (shapes from the PyTorch module)
# ---------------------------------------------------------------------------
def _conv_weight(key, cout, cin, kh, kw, scale=0.1):
    w = scale * jax.random.normal(key, (cout, cin, kh, kw), jnp.float32)
    # (C_out, C_in, kh, kw) -> (kh, kw, C_in, C_out) -> (kh*kw*C_in, C_out)
    w = jnp.transpose(w, (2, 3, 1, 0)).reshape(kh * kw * cin, cout)
    k = w.shape[0]
    kp = _round_up(k, 128)                 # zero-pad K to 128 (lane-dense MXU)
    if kp != k:
        w = jnp.pad(w, ((0, kp - k), (0, 0)))
    return w.astype(jnp.bfloat16)


def init_resnet18_params(key):
    planes = [32, 64, 128, 256]
    layers = [2, 2, 2, 2]
    keys = iter(jax.random.split(key, 256))

    def bn(c):
        g = 1.0 + 0.1 * jax.random.normal(next(keys), (c,), jnp.float32)
        b = 0.1 * jax.random.normal(next(keys), (c,), jnp.float32)
        return g, b

    params = {}
    params["conv1_w"] = _conv_weight(next(keys), planes[0], 1, 7, 7)
    params["bn1_g"], params["bn1_b"] = bn(planes[0])

    stages = []
    in_c = planes[0]
    for p, nblocks, stride in zip(planes, layers, (1, 2, 2, 2)):
        blocks = []
        for b_idx in range(nblocks):
            st = stride if b_idx == 0 else 1
            blk = {
                "stride": st,
                "w1": _conv_weight(next(keys), p, in_c, 3, 3),
                "w2": _conv_weight(next(keys), p, p, 3, 3),
            }
            blk["g1"], blk["b1"] = bn(p)
            blk["g2"], blk["b2"] = bn(p)
            if st != 1 or in_c != p:   # shortcut type "B": 1x1 conv + BN
                blk["dw"] = _conv_weight(next(keys), p, in_c, 1, 1)
                blk["dg"], blk["db"] = bn(p)
            blocks.append(blk)
            in_c = p
        stages.append(blocks)
    params["stages"] = stages

    # nn.Linear(256, 1): weight (1, 256), bias (1,)
    fc_w = 0.1 * jax.random.normal(next(keys), (1, planes[-1]), jnp.float32)
    fc_b = 0.1 * jax.random.normal(next(keys), (1,), jnp.float32)
    params["fc_w"] = jnp.transpose(fc_w)          # (256, 1) f32
    params["fc_b"] = fc_b                         # (1,)
    return params


if __name__ == "__main__":
    key = jax.random.PRNGKey(0)
    pkey, xkey, t1, t2 = jax.random.split(key, 4)

    # --- unit check 1: fused single-launch conv+BN + proj-residual + ReLU ---
    ks = jax.random.split(t1, 8)
    M, K, C = 20, 128, 32
    p = jax.random.normal(ks[0], (M, K), jnp.float32).astype(jnp.bfloat16)
    w = (jax.random.normal(ks[1], (K, C), jnp.float32) / K ** 0.5
         ).astype(jnp.bfloat16)
    pd = jax.random.normal(ks[2], (M, K), jnp.float32).astype(jnp.bfloat16)
    wd = (jax.random.normal(ks[3], (K, C), jnp.float32) / K ** 0.5
          ).astype(jnp.bfloat16)
    g1 = 1.0 + 0.1 * jax.random.normal(ks[4], (C,), jnp.float32)
    b1 = 0.1 * jax.random.normal(ks[5], (C,), jnp.float32)
    g2 = 1.0 + 0.1 * jax.random.normal(ks[6], (C,), jnp.float32)
    b2 = 0.1 * jax.random.normal(ks[7], (C,), jnp.float32)
    fused_fn = jax.jit(lambda a, wa, ga, ba, ad, wda, gd, bd: conv_block(
        a, wa, ga, ba, relu=True, out_dtype=jnp.float32,
        proj_patches=ad, proj_w=wda, proj_gamma=gd, proj_beta=bd))
    got = jax.block_until_ready(fused_fn(p, w, g1, b1, pd, wd, g2, b2))
    ref = _fused_proj_ref(p, w, g1, b1, pd, wd, g2, b2, relu=True)
    assert float(jnp.max(jnp.abs(got - ref))) < 2e-2

    # --- unit check 2: two-pass tiled path (grid_m > 1, masked tail rows) ---
    ks2 = jax.random.split(t2, 4)
    M2, K2, C2 = 2600, 128, 64
    p2 = jax.random.normal(ks2[0], (M2, K2), jnp.float32).astype(jnp.bfloat16)
    w2 = (jax.random.normal(ks2[1], (K2, C2), jnp.float32) / K2 ** 0.5
          ).astype(jnp.bfloat16)
    g3 = 1.0 + 0.1 * jax.random.normal(ks2[2], (C2,), jnp.float32)
    b3 = 0.1 * jax.random.normal(ks2[3], (C2,), jnp.float32)
    plain_fn = jax.jit(lambda a, wa, ga, ba: conv_block(
        a, wa, ga, ba, relu=True, out_dtype=jnp.float32))
    got2 = jax.block_until_ready(plain_fn(p2, w2, g3, b3))
    ref2 = _conv_bn_ref(p2, w2, g3, b3, relu=True)
    assert float(jnp.max(jnp.abs(got2 - ref2))) < 3e-2   # bf16 raw round trip

    # --- full ResNet-18 forward ---------------------------------------------
    params = init_resnet18_params(pkey)
    # n_input_channels=1, small spatial size; NCHW like the PyTorch module.
    x = jax.random.normal(xkey, (2, 1, 16, 16), jnp.float32)

    fwd = jax.jit(lambda inp: resnet18_forward(inp, params))
    out = jax.block_until_ready(fwd(x))

    assert out.shape == (2, 1)
    assert bool(jnp.all(jnp.isfinite(out)))
    assert bool(jnp.all((out >= 0.0) & (out <= 1.0)))  # sigmoid range
    print("KERNEL_OK")
</pallas_src>

<mosaic_0001>
module attributes {stable_mosaic.version = 11 : i64} {
  func.func @_fused_conv_bn_kernel(%arg0: memref<20x128xbf16, #tpu.memory_space<vmem>>, %arg1: memref<128x32xbf16, #tpu.memory_space<vmem>>, %arg2: memref<1x32xf32, #tpu.memory_space<vmem>>, %arg3: memref<1x32xf32, #tpu.memory_space<vmem>>, %arg4: memref<20x128xbf16, #tpu.memory_space<vmem>>, %arg5: memref<128x32xbf16, #tpu.memory_space<vmem>>, %arg6: memref<1x32xf32, #tpu.memory_space<vmem>>, %arg7: memref<1x32xf32, #tpu.memory_space<vmem>>, %arg8: memref<20x32xf32, #tpu.memory_space<vmem>>) attributes {dimension_semantics = [], scalar_prefetch = 0 : i64, scratch_operands = 0 : i64, tpu.core_type = #tpu.core_type<tc>} {
    %c0 = arith.constant 0 : index
    %c0_0 = arith.constant 0 : index
    %0 = vector.load %arg0[%c0, %c0_0] : memref<20x128xbf16, #tpu.memory_space<vmem>>, vector<20x128xbf16>
    %c0_1 = arith.constant 0 : index
    %c0_2 = arith.constant 0 : index
    %1 = vector.load %arg1[%c0_1, %c0_2] : memref<128x32xbf16, #tpu.memory_space<vmem>>, vector<128x32xbf16>
    %cst = arith.constant dense<0.000000e+00> : vector<20x32xf32>
    %2 = tpu.matmul %0, %1, %cst {dimension_numbers = #tpu.dot_dimension_numbers<[1], [0], [0], [1], [0, 0, 1, 1], [], []>} : vector<20x128xbf16>, vector<128x32xbf16>, vector<20x32xf32> -> vector<20x32xf32>
    %cst_3 = arith.constant dense<0.000000e+00> : vector<32xf32>
    %3 = vector.multi_reduction <add>, %2, %cst_3 [0] : vector<20x32xf32> to vector<32xf32>
    %4 = vector.shape_cast %3 : vector<32xf32> to vector<1x32xf32>
    %cst_4 = arith.constant 2.000000e+01 : f32
    %5 = vector.broadcast %cst_4 : f32 to vector<1x32xf32>
    %6 = arith.divf %4, %5 : vector<1x32xf32>
    %7 = arith.mulf %2, %2 : vector<20x32xf32>
    %cst_5 = arith.constant dense<0.000000e+00> : vector<32xf32>
    %8 = vector.multi_reduction <add>, %7, %cst_5 [0] : vector<20x32xf32> to vector<32xf32>
    %9 = vector.shape_cast %8 : vector<32xf32> to vector<1x32xf32>
    %cst_6 = arith.constant 2.000000e+01 : f32
    %10 = vector.broadcast %cst_6 : f32 to vector<1x32xf32>
    %11 = arith.divf %9, %10 : vector<1x32xf32>
    %12 = arith.mulf %6, %6 : vector<1x32xf32>
    %13 = arith.subf %11, %12 : vector<1x32xf32>
    %cst_7 = arith.constant 0.000000e+00 : f32
    %14 = vector.broadcast %cst_7 : f32 to vector<1x32xf32>
    %15 = arith.maximumf %13, %14 : vector<1x32xf32>
    %c0_8 = arith.constant 0 : index
    %c0_9 = arith.constant 0 : index
    %16 = vector.load %arg2[%c0_8, %c0_9] : memref<1x32xf32, #tpu.memory_space<vmem>>, vector<1x32xf32>
    %cst_10 = arith.constant 9.99999974E-6 : f32
    %17 = vector.broadcast %cst_10 : f32 to vector<1x32xf32>
    %18 = arith.addf %15, %17 : vector<1x32xf32>
    %19 = math.rsqrt %18 : vector<1x32xf32>
    %20 = arith.mulf %16, %19 : vector<1x32xf32>
    %21 = vector.broadcast %6 : vector<1x32xf32> to vector<20x32xf32>
    %22 = arith.subf %2, %21 : vector<20x32xf32>
    %23 = vector.broadcast %20 : vector<1x32xf32> to vector<20x32xf32>
    %24 = arith.mulf %22, %23 : vector<20x32xf32>
    %c0_11 = arith.constant 0 : index
    %c0_12 = arith.constant 0 : index
    %25 = vector.load %arg3[%c0_11, %c0_12] : memref<1x32xf32, #tpu.memory_space<vmem>>, vector<1x32xf32>
    %26 = vector.broadcast %25 : vector<1x32xf32> to vector<20x32xf32>
    %27 = arith.addf %24, %26 : vector<20x32xf32>
    %c0_13 = arith.constant 0 : index
    %c0_14 = arith.constant 0 : index
    %28 = vector.load %arg4[%c0_13, %c0_14] : memref<20x128xbf16, #tpu.memory_space<vmem>>, vector<20x128xbf16>
    %c0_15 = arith.constant 0 : index
    %c0_16 = arith.constant 0 : index
    %29 = vector.load %arg5[%c0_15, %c0_16] : memref<128x32xbf16, #tpu.memory_space<vmem>>, vector<128x32xbf16>
    %cst_17 = arith.constant dense<0.000000e+00> : vector<20x32xf32>
    %30 = tpu.matmul %28, %29, %cst_17 {dimension_numbers = #tpu.dot_dimension_numbers<[1], [0], [0], [1], [0, 0, 1, 1], [], []>} : vector<20x128xbf16>, vector<128x32xbf16>, vector<20x32xf32> -> vector<20x32xf32>
    %cst_18 = arith.constant dense<0.000000e+00> : vector<32xf32>
    %31 = vector.multi_reduction <add>, %30, %cst_18 [0] : vector<20x32xf32> to vector<32xf32>
    %32 = vector.shape_cast %31 : vector<32xf32> to vector<1x32xf32>
    %cst_19 = arith.constant 2.000000e+01 : f32
    %33 = vector.broadcast %cst_19 : f32 to vector<1x32xf32>
    %34 = arith.divf %32, %33 : vector<1x32xf32>
    %35 = arith.mulf %30, %30 : vector<20x32xf32>
    %cst_20 = arith.constant dense<0.000000e+00> : vector<32xf32>
    %36 = vector.multi_reduction <add>, %35, %cst_20 [0] : vector<20x32xf32> to vector<32xf32>
    %37 = vector.shape_cast %36 : vector<32xf32> to vector<1x32xf32>
    %cst_21 = arith.constant 2.000000e+01 : f32
    %38 = vector.broadcast %cst_21 : f32 to vector<1x32xf32>
    %39 = arith.divf %37, %38 : vector<1x32xf32>
    %40 = arith.mulf %34, %34 : vector<1x32xf32>
    %41 = arith.subf %39, %40 : vector<1x32xf32>
    %cst_22 = arith.constant 0.000000e+00 : f32
    %42 = vector.broadcast %cst_22 : f32 to vector<1x32xf32>
    %43 = arith.maximumf %41, %42 : vector<1x32xf32>
    %c0_23 = arith.constant 0 : index
    %c0_24 = arith.constant 0 : index
    %44 = vector.load %arg6[%c0_23, %c0_24] : memref<1x32xf32, #tpu.memory_space<vmem>>, vector<1x32xf32>
    %cst_25 = arith.constant 9.99999974E-6 : f32
    %45 = vector.broadcast %cst_25 : f32 to vector<1x32xf32>
    %46 = arith.addf %43, %45 : vector<1x32xf32>
    %47 = math.rsqrt %46 : vector<1x32xf32>
    %48 = arith.mulf %44, %47 : vector<1x32xf32>
    %49 = vector.broadcast %34 : vector<1x32xf32> to vector<20x32xf32>
    %50 = arith.subf %30, %49 : vector<20x32xf32>
    %51 = vector.broadcast %48 : vector<1x32xf32> to vector<20x32xf32>
    %52 = arith.mulf %50, %51 : vector<20x32xf32>
    %c0_26 = arith.constant 0 : index
    %c0_27 = arith.constant 0 : index
    %53 = vector.load %arg7[%c0_26, %c0_27] : memref<1x32xf32, #tpu.memory_space<vmem>>, vector<1x32xf32>
    %54 = vector.broadcast %53 : vector<1x32xf32> to vector<20x32xf32>
    %55 = arith.addf %52, %54 : vector<20x32xf32>
    %56 = arith.addf %27, %55 : vector<20x32xf32>
    %cst_28 = arith.constant 0.000000e+00 : f32
    %57 = vector.broadcast %cst_28 : f32 to vector<20x32xf32>
    %58 = arith.maximumf %56, %57 : vector<20x32xf32>
    %c0_29 = arith.constant 0 : index
    %c0_30 = arith.constant 0 : index
    %59 = vector.load %arg8[%c0_29, %c0_30] : memref<20x32xf32, #tpu.memory_space<vmem>>, vector<20x32xf32>
    tpu.vector_store %arg8[%c0_29, %c0_30], %58 {strides = array<i32>} : memref<20x32xf32, #tpu.memory_space<vmem>>, vector<20x32xf32>,
    return
  }
}

</mosaic_0001>

<llo_original>
// kernel: _lambda_.1
$region0: #{_lambda_.1}
  #allocation0 [shape = 'u32[]', space=smem, size = 0x4, offset = 0x4, fixed_abs, tag = 'smem constant byte address 0x4 - core index']
  #allocation1 [shape = 'u32[72,128]{1,0:T(1,128)}', space=vmem, size = 0x9000, scoped, tag = 'internal scratch']
  %s0 = inlined_call_operand.vmem [shape: bf16[20,128], index: 0, kind: input, shape index: {}]
  %s1 = inlined_call_operand.vmem [shape: bf16[128,32], index: 1, kind: input, shape index: {}]
  %s2 = inlined_call_operand.vmem [shape: f32[1,32], index: 2, kind: input, shape index: {}]
  %s3 = inlined_call_operand.vmem [shape: f32[1,32], index: 3, kind: input, shape index: {}]
  %s4 = inlined_call_operand.vmem [shape: bf16[20,128], index: 4, kind: input, shape index: {}]
  %s5 = inlined_call_operand.vmem [shape: bf16[128,32], index: 5, kind: input, shape index: {}]
  %s6 = inlined_call_operand.vmem [shape: f32[1,32], index: 6, kind: input, shape index: {}]
  %s7 = inlined_call_operand.vmem [shape: f32[1,32], index: 7, kind: input, shape index: {}]
  %s8 = inlined_call_operand.hbm [shape: f32[20,32], index: 8, kind: output, shape index: {}]
  %s9 = sld [smem:[#allocation0]]
  $region42: #{_lambda_.1} parent=0
    _
  %s11 = ssub.s32 1, %s9
  %s12 = scalar_select 0, %s11, %s9
  $region1: #{_lambda_.1} parent=0
    #allocation2 [shape = 'u8[12288]{0}', space=vmem, size = 0x3000, scoped, tag = 'output window, operand 0, single buffered']
    #allocation3 [shape = 's32[1]{0}', space=sflag, size = 0x4, scoped, tag = 'scoped memory for _lambda_.1']
    %13 = vsyncpa [#allocation3], 0
    // Predicated region
    $region2: #{_lambda_.1} parent=1 // pred_check
      _
    $region3: #{_lambda_.1} parent=1 // pred_check_branch
      %15 = sbr.rel (0) target = $region5
    $region4: #{_lambda_.1} parent=1 // pred_region
      _
    $region5: #{_lambda_.1} parent=1 // pred_fallthru
      _
    // Predicated region
    $region6: #{_lambda_.1} parent=1 // pred_check
      _
    $region7: #{_lambda_.1} parent=1 // pred_check_branch
      %17 = sbr.rel (0) target = $region9
    $region8: #{_lambda_.1} parent=1 // pred_region
      _
    $region9: #{_lambda_.1} parent=1 // pred_fallthru
      _
    // Predicated region
    $region10: #{_lambda_.1} parent=1 // pred_check
      _
    $region11: #{_lambda_.1} parent=1 // pred_check_branch
      %19 = sbr.rel (0) target = $region13
    $region12: #{_lambda_.1} parent=1 // pred_region
      _
    $region13: #{_lambda_.1} parent=1 // pred_fallthru
      _
    // Predicated region
    $region14: #{_lambda_.1} parent=1 // pred_check
      _
    $region15: #{_lambda_.1} parent=1 // pred_check_branch
      %21 = sbr.rel (0) target = $region17
    $region16: #{_lambda_.1} parent=1 // pred_region
      _
    $region17: #{_lambda_.1} parent=1 // pred_fallthru
      _
    // Predicated region
    $region18: #{_lambda_.1} parent=1 // pred_check
      _
    $region19: #{_lambda_.1} parent=1 // pred_check_branch
      %23 = sbr.rel (0) target = $region21
    $region20: #{_lambda_.1} parent=1 // pred_region
      _
    $region21: #{_lambda_.1} parent=1 // pred_fallthru
      _
    // Predicated region
    $region22: #{_lambda_.1} parent=1 // pred_check
      _
    $region23: #{_lambda_.1} parent=1 // pred_check_branch
      %25 = sbr.rel (0) target = $region25
    $region24: #{_lambda_.1} parent=1 // pred_region
      _
    $region25: #{_lambda_.1} parent=1 // pred_fallthru
      _
    // Predicated region
    $region26: #{_lambda_.1} parent=1 // pred_check
      _
    $region27: #{_lambda_.1} parent=1 // pred_check_branch
      %27 = sbr.rel (0) target = $region29
    $region28: #{_lambda_.1} parent=1 // pred_region
      _
    $region29: #{_lambda_.1} parent=1 // pred_fallthru
      _
    // Predicated region
    $region30: #{_lambda_.1} parent=1 // pred_check
      _
    $region31: #{_lambda_.1} parent=1 // pred_check_branch
      %29 = sbr.rel (0) target = $region33
    $region32: #{_lambda_.1} parent=1 // pred_region
      _
    $region33: #{_lambda_.1} parent=1 // pred_fallthru
      _
    %v30 = vld [vmem:[%s0] sm:$0xf]
    %v31 = vld [vmem:[%s0 + $0x4] sm:$0xf]
    %v32 = vld [vmem:[%s0 + $0x8] sm:$0x3]
    %v33 = vld [vmem:[%s1] sm:$0xf]
    %v34 = vld [vmem:[%s1 + $0x4] sm:$0xf]
    %v35 = vld [vmem:[%s1 + $0x8] sm:$0xf]
    %v36 = vld [vmem:[%s1 + $0xc] sm:$0xf]
    %v37 = vld [vmem:[%s1 + $0x10] sm:$0xf]
    %v38 = vld [vmem:[%s1 + $0x14] sm:$0xf]
    %v39 = vld [vmem:[%s1 + $0x18] sm:$0xf]
    %v40 = vld [vmem:[%s1 + $0x1c] sm:$0xf]
    %v41 = vld [vmem:[%s1 + $0x20] sm:$0xf]
    %v42 = vld [vmem:[%s1 + $0x24] sm:$0xf]
    %v43 = vld [vmem:[%s1 + $0x28] sm:$0xf]
    %v44 = vld [vmem:[%s1 + $0x2c] sm:$0xf]
    %v45 = vld [vmem:[%s1 + $0x30] sm:$0xf]
    %v46 = vld [vmem:[%s1 + $0x34] sm:$0xf]
    %v47 = vld [vmem:[%s1 + $0x38] sm:$0xf]
    %v48 = vld [vmem:[%s1 + $0x3c] sm:$0xf]
    %v52 = vunpack.c.l.b16 %v30
    %v53 = vunpack.c.l.b16 %v31
    %v54 = vunpack.c.l.b16 %v32
    %v55 = vpack.c.b16 %v53, %v52
    %v56 = vpack.c.b16 %v54, %v54
    %v75 = vunpack.c.l.b16 %v33
    %v76 = vunpack.c.l.b16 %v34
    %v77 = vunpack.c.l.b16 %v35
    %v78 = vunpack.c.l.b16 %v36
    %v79 = vunpack.c.l.b16 %v37
    %v80 = vunpack.c.l.b16 %v38
    %v81 = vunpack.c.l.b16 %v39
    %v82 = vunpack.c.l.b16 %v40
    %v83 = vunpack.c.l.b16 %v41
    %v84 = vunpack.c.l.b16 %v42
    %v85 = vunpack.c.l.b16 %v43
    %v86 = vunpack.c.l.b16 %v44
    %v87 = vunpack.c.l.b16 %v45
    %v88 = vunpack.c.l.b16 %v46
    %v89 = vunpack.c.l.b16 %v47
    %v90 = vunpack.c.l.b16 %v48
    %v91 = vpack.c.b16 %v76, %v75
    %v92 = vpack.c.b16 %v78, %v77
    %v93 = vpack.c.b16 %v80, %v79
    %v94 = vpack.c.b16 %v82, %v81
    %v95 = vpack.c.b16 %v84, %v83
    %v96 = vpack.c.b16 %v86, %v85
    %v97 = vpack.c.b16 %v88, %v87
    %v98 = vpack.c.b16 %v90, %v89
    %107 = vmatpush.bf16.msra.mxu0 %v98
    %108 = vmatpush.bf16.msra.mxu0 %v97
    %109 = vmatpush.bf16.msra.mxu0 %v96
    %110 = vmatpush.bf16.msra.mxu0 %v95
    %111 = vmatpush.bf16.msra.mxu0 %v94
    %112 = vmatpush.bf16.msra.mxu0 %v93
    %113 = vmatpush.bf16.msra.mxu0 %v92
    %114 = vmatpush.bf16.msra.mxu0 %v91
    %115 = vmatmul.bf16.gmra.mxu0 %v55
    %v116 = vpop.f32.mrf.mxu0
    %v117 = vadd.f32 0.0, %v116
    %v118 = vpop.f32.mrf.mxu0
    %v119 = vadd.f32 0.0, %v118
    %120 = vmatmul.bf16.gmra.mxu0 %v56
    %v121 = vpop.f32.mrf.mxu0
    %v122 = vadd.f32 0.0, %v121
    %v123 = vpop.f32.mrf.mxu0
    %124 = vdwg.mxu0
    %vm125 = vcmask 261120
    %v126 = vsel %vm125, %v117, 0.0
    %v127 = vsel %vm125, %v119, 0.0
    %v128 = vadd.f32 %v126, %v127
    %vm129 = vcmask 257024
    %v130 = vsel %vm129, %v122, 0.0
    %v131 = vadd.f32 %v128, %v130
    %v132 = vrot.slane %v131, 4
    %v133 = vadd.f32 %v131, %v132
    %v134 = vrot.slane %v133, 2
    %v135 = vadd.f32 %v133, %v134
    %v136 = vrot.slane %v135, 1
    %v137 = vadd.f32 %v135, %v136
    %v138 = vrcp.pop 20.0
    %v139 = vmul.f32 20.0, %v138
    %v140 = vsub.f32 1.0, %v139
    %v141 = vmul.f32 %v138, %v140
    %v142 = vadd.f32 %v138, %v141
    %vm143 = vweird.f32 %v138
    %v144 = vsel %vm143, %v138, %v142
    %v145 = vmul.f32 %v137, %v144
    %v146 = vmul.f32 %v117, %v117
    %v147 = vmul.f32 %v119, %v119
    %v148 = vmul.f32 %v122, %v122
    %v149 = vsel %vm125, %v146, 0.0
    %v150 = vsel %vm125, %v147, 0.0
    %v151 = vadd.f32 %v149, %v150
    %v152 = vsel %vm129, %v148, 0.0
    %v153 = vadd.f32 %v151, %v152
    %v154 = vrot.slane %v153, 4
    %v155 = vadd.f32 %v153, %v154
    %v156 = vrot.slane %v155, 2
    %v157 = vadd.f32 %v155, %v156
    %v158 = vrot.slane %v157, 1
    %v159 = vadd.f32 %v157, %v158
    %v160 = vmul.f32 %v159, %v144
    %v161 = vmul.f32 %v145, %v145
    %v162 = vsub.f32 %v160, %v161
    %v163 = vmax.f32 %v162, 0.0
    %v164 = vld [vmem:[%s2] sm:$0x1]
    %v165 = vadd.f32 %v163, 1e-05
    %v166 = vrsqrt.pop %v165
    %v167 = vmul.f32 %v166, %v165
    %v168 = vmul.f32 %v167, %v166
    %v169 = vmul.f32 0.5, %v168
    %v170 = vsub.f32 1.5, %v169
    %v171 = vmul.f32 %v166, %v170
    %vm172 = vweird.f32 %v165
    %vm173 = vweird.f32 %v166
    %vm174 = vmor %vm172, %vm173
    %v175 = vsel %vm174, %v166, %v171
    %v176 = vmul.f32 %v164, %v175
    %v177 = vsub.f32 %v117, %v145
    %v178 = vsub.f32 %v119, %v145
    %v179 = vsub.f32 %v122, %v145
    %v181 = vperm.slane %v176, 0
    %v183 = vmul.f32 %v177, %v181
    %v184 = vmul.f32 %v178, %v181
    %v185 = vmul.f32 %v179, %v181
    %v186 = vld [vmem:[%s3] sm:$0x1]
    %v188 = vperm.slane %v186, 0
    %v190 = vadd.f32 %v183, %v188
    %v191 = vadd.f32 %v184, %v188
    %v192 = vadd.f32 %v185, %v188
    %v193 = vld [vmem:[%s4] sm:$0xf]
    %v194 = vld [vmem:[%s4 + $0x4] sm:$0xf]
    %v195 = vld [vmem:[%s4 + $0x8] sm:$0x3]
    %v196 = vld [vmem:[%s5] sm:$0xf]
    %v197 = vld [vmem:[%s5 + $0x4] sm:$0xf]
    %v198 = vld [vmem:[%s5 + $0x8] sm:$0xf]
    %v199 = vld [vmem:[%s5 + $0xc] sm:$0xf]
    %v200 = vld [vmem:[%s5 + $0x10] sm:$0xf]
    %v201 = vld [vmem:[%s5 + $0x14] sm:$0xf]
    %v202 = vld [vmem:[%s5 + $0x18] sm:$0xf]
    %v203 = vld [vmem:[%s5 + $0x1c] sm:$0xf]
    %v204 = vld [vmem:[%s5 + $0x20] sm:$0xf]
    %v205 = vld [vmem:[%s5 + $0x24] sm:$0xf]
    %v206 = vld [vmem:[%s5 + $0x28] sm:$0xf]
    %v207 = vld [vmem:[%s5 + $0x2c] sm:$0xf]
    %v208 = vld [vmem:[%s5 + $0x30] sm:$0xf]
    %v209 = vld [vmem:[%s5 + $0x34] sm:$0xf]
    %v210 = vld [vmem:[%s5 + $0x38] sm:$0xf]
    %v211 = vld [vmem:[%s5 + $0x3c] sm:$0xf]
    %v215 = vunpack.c.l.b16 %v193
    %v216 = vunpack.c.l.b16 %v194
    %v217 = vunpack.c.l.b16 %v195
    %v218 = vpack.c.b16 %v216, %v215
    %v219 = vpack.c.b16 %v217, %v217
    %v238 = vunpack.c.l.b16 %v196
    %v239 = vunpack.c.l.b16 %v197
    %v240 = vunpack.c.l.b16 %v198
    %v241 = vunpack.c.l.b16 %v199
    %v242 = vunpack.c.l.b16 %v200
    %v243 = vunpack.c.l.b16 %v201
    %v244 = vunpack.c.l.b16 %v202
    %v245 = vunpack.c.l.b16 %v203
    %v246 = vunpack.c.l.b16 %v204
    %v247 = vunpack.c.l.b16 %v205
    %v248 = vunpack.c.l.b16 %v206
    %v249 = vunpack.c.l.b16 %v207
    %v250 = vunpack.c.l.b16 %v208
    %v251 = vunpack.c.l.b16 %v209
    %v252 = vunpack.c.l.b16 %v210
    %v253 = vunpack.c.l.b16 %v211
    %v254 = vpack.c.b16 %v239, %v238
    %v255 = vpack.c.b16 %v241, %v240
    %v256 = vpack.c.b16 %v243, %v242
    %v257 = vpack.c.b16 %v245, %v244
    %v258 = vpack.c.b16 %v247, %v246
    %v259 = vpack.c.b16 %v249, %v248
    %v260 = vpack.c.b16 %v251, %v250
    %v261 = vpack.c.b16 %v253, %v252
    %270 = vmatpush.bf16.msra.mxu0 %v261
    %271 = vmatpush.bf16.msra.mxu0 %v260
    %272 = vmatpush.bf16.msra.mxu0 %v259
    %273 = vmatpush.bf16.msra.mxu0 %v258
    %274 = vmatpush.bf16.msra.mxu0 %v257
    %275 = vmatpush.bf16.msra.mxu0 %v256
    %276 = vmatpush.bf16.msra.mxu0 %v255
    %277 = vmatpush.bf16.msra.mxu0 %v254
    %278 = vmatmul.bf16.gmra.mxu0 %v218
    %v279 = vpop.f32.mrf.mxu0
    %v280 = vadd.f32 0.0, %v279
    %v281 = vpop.f32.mrf.mxu0
    %v282 = vadd.f32 0.0, %v281
    %283 = vmatmul.bf16.gmra.mxu0 %v219
    %v284 = vpop.f32.mrf.mxu0
    %v285 = vadd.f32 0.0, %v284
    %v286 = vpop.f32.mrf.mxu0
    %287 = vdwg.mxu0
    %v288 = vsel %vm125, %v280, 0.0
    %v289 = vsel %vm125, %v282, 0.0
    %v290 = vadd.f32 %v288, %v289
    %v291 = vsel %vm129, %v285, 0.0
    %v292 = vadd.f32 %v290, %v291
    %v293 = vrot.slane %v292, 4
    %v294 = vadd.f32 %v292, %v293
    %v295 = vrot.slane %v294, 2
    %v296 = vadd.f32 %v294, %v295
    %v297 = vrot.slane %v296, 1
    %v298 = vadd.f32 %v296, %v297
    %v299 = vmul.f32 %v298, %v144
    %v300 = vmul.f32 %v280, %v280
    %v301 = vmul.f32 %v282, %v282
    %v302 = vmul.f32 %v285, %v285
    %v303 = vsel %vm125, %v300, 0.0
    %v304 = vsel %vm125, %v301, 0.0
    %v305 = vadd.f32 %v303, %v304
    %v306 = vsel %vm129, %v302, 0.0
    %v307 = vadd.f32 %v305, %v306
    %v308 = vrot.slane %v307, 4
    %v309 = vadd.f32 %v307, %v308
    %v310 = vrot.slane %v309, 2
    %v311 = vadd.f32 %v309, %v310
    %v312 = vrot.slane %v311, 1
    %v313 = vadd.f32 %v311, %v312
    %v314 = vmul.f32 %v313, %v144
    %v315 = vmul.f32 %v299, %v299
    %v316 = vsub.f32 %v314, %v315
    %v317 = vmax.f32 %v316, 0.0
    %v318 = vld [vmem:[%s6] sm:$0x1]
    %v319 = vadd.f32 %v317, 1e-05
    %v320 = vrsqrt.pop %v319
    %v321 = vmul.f32 %v320, %v319
    %v322 = vmul.f32 %v321, %v320
    %v323 = vmul.f32 0.5, %v322
    %v324 = vsub.f32 1.5, %v323
    %v325 = vmul.f32 %v320, %v324
    %vm326 = vweird.f32 %v319
    %vm327 = vweird.f32 %v320
    %vm328 = vmor %vm326, %vm327
    %v329 = vsel %vm328, %v320, %v325
    %v330 = vmul.f32 %v318, %v329
    %v331 = vsub.f32 %v280, %v299
    %v332 = vsub.f32 %v282, %v299
    %v333 = vsub.f32 %v285, %v299
    %v335 = vperm.slane %v330, 0
    %v337 = vmul.f32 %v331, %v335
    %v338 = vmul.f32 %v332, %v335
    %v339 = vmul.f32 %v333, %v335
    %v340 = vld [vmem:[%s7] sm:$0x1]
    %v342 = vperm.slane %v340, 0
    %v344 = vadd.f32 %v337, %v342
    %v345 = vadd.f32 %v338, %v342
    %v346 = vadd.f32 %v339, %v342
    %v347 = vadd.f32 %v190, %v344
    %v348 = vadd.f32 %v191, %v345
    %v349 = vadd.f32 %v192, %v346
    %v350 = vmax.f32 %v347, 0.0
    %v351 = vmax.f32 %v348, 0.0
    %v352 = vmax.f32 %v349, 0.0
    %353 = vst.msk [vmem:[#allocation2] sm:$0xff] %vm125, %v350
    %354 = vst.msk [vmem:[#allocation2 + $0x8] sm:$0xff] %vm125, %v351
    %355 = vst.msk [vmem:[#allocation2 + $0x10] sm:$0xf] %vm129, %v352
    // Predicated region
    $region34: #{_lambda_.1} parent=1 // pred_check
      _
    $region35: #{_lambda_.1} parent=1 // pred_check_branch
      %357 = sbr.rel (0) target = $region37
    $region36: #{_lambda_.1} parent=1 // pred_region
      %359 = vsyncadd [#allocation3], 0
      %s360 = sshll.u32 [#allocation2], 4
      %s361 = int_to_ptr.vmem [resolvable:$true] %s360
      %s362 = sshll.u32 %s8, 4
      %s363 = int_to_ptr.hbm [resolvable:$true] %s362
      %368 = dma.vmem_to_hbm [thread:$0]  %s361, 384, %s363, [#allocation3], 128, 128, 8
    $region37: #{_lambda_.1} parent=1 // pred_fallthru
      _
    // Predicated region
    $region38: #{_lambda_.1} parent=1 // pred_check
      _
    $region39: #{_lambda_.1} parent=1 // pred_check_branch
      %370 = sbr.rel (0) target = $region41
    $region40: #{_lambda_.1} parent=1 // pred_region
      %372 = dma.done [#allocation3], 384
    $region41: #{_lambda_.1} parent=1 // pred_fallthru
      _
    %373 = vsyncpa [#allocation3], 1

</llo_original>
